<compile_context>
chip_gen: v7x
topology: tpu7x:2x2x1
jax: 0.10.0
libtpu: 0.0.40
codegen_flags: <defaults>
</compile_context>

<pallas_src>
import jax
import jax.numpy as jnp
from jax.experimental import pallas as pl
from jax.experimental.pallas import tpu as pltpu


def _copy_kernel(x_ref, o_ref):
    """forward(x) = get_feature(x); the base class defines no transform, so
    this is an exact pass-through of the current block."""
    o_ref[...] = x_ref[...]


# Lane-dense layout search space (last dim of the flattened slab).
_LANE_CANDIDATES = (2048, 1024, 512, 256, 128)
# ~8 MiB per block: per-grid-step overhead (~0.35 us) stays a small fraction
# of each step even at v7x's ~3.2 TB/s per-TC HBM bandwidth.
_TARGET_BLOCK_BYTES = 8 * 1024 * 1024
# input (up to 3 buffers) + output (2 buffers) at 8 MiB each = ~40 MiB,
# comfortably inside v7x's 64 MiB physical VMEM (and trivially v5e/v6e's 128).
_VMEM_LIMIT_BYTES = 48 * 1024 * 1024


def _min_row_tile(itemsize: int) -> int:
    """Native packed sublane tile height: 8 rows for 32-bit dtypes, 16 for
    16-bit (bf16/f16), 32 for 8-bit (int8/fp8)."""
    if itemsize >= 4:
        return 8
    if itemsize == 2:
        return 16
    return 32


def backbone2_base_forward(x: jax.Array) -> jax.Array:
    """Pallas equivalent of Backbone2Base.forward(x).

    NOTE: since the base-class forward is the identity, the zero-cost faithful
    implementation is `return x` (and, inside a larger jitted program with a
    donated input, `input_output_aliases={0: 0}` would avoid the second HBM
    buffer).  The Pallas copy below keeps an explicit kernel path while
    minimizing its cost via a lane-dense, VMEM-sized cdiv tiling.
    """
    orig_shape = x.shape
    total = x.size
    itemsize = jnp.dtype(x.dtype).itemsize

    # Widest lane-dense last dim (multiple of 128) that divides the flattened
    # element count -> full-width unmasked vector stores.
    lanes = next((c for c in _LANE_CANDIDATES if total % c == 0), None)

    if lanes is None or total == 0:
        # TODO(synk): no multiple-of-128 factorization of the element count;
        # the faithful (and cheapest) forward of the abstract base is identity.
        return x

    rows = total // lanes
    min_rows = _min_row_tile(itemsize)

    # Target ~8 MiB blocks, rounded down to the native sublane tile height.
    target_rows = max(
        min_rows,
        (_TARGET_BLOCK_BYTES // (lanes * itemsize)) // min_rows * min_rows,
    )
    block_rows = min(target_rows, rows)

    # Feed both v7x TensorCores whenever there is enough work (no-op on the
    # single-TC v5e/v6e chips).
    if pl.cdiv(rows, block_rows) < 2 and rows >= 2 * min_rows:
        block_rows = max(min_rows, (rows // 2) // min_rows * min_rows)

    num_blocks = pl.cdiv(rows, block_rows)  # ragged tail handled by Pallas.

    # A pure copy has no compute to hide DMA behind: triple-buffer the input
    # so step i+1's HBM read overlaps step i's write-back (only worthwhile
    # when there are enough grid steps).
    if num_blocks >= 3:
        in_spec = pl.BlockSpec((block_rows, lanes), lambda i: (i, 0),
                               pipeline_mode=pl.Buffered(3))
    else:
        in_spec = pl.BlockSpec((block_rows, lanes), lambda i: (i, 0))

    x2 = x.reshape(rows, lanes)

    y2 = pl.pallas_call(
        _copy_kernel,
        out_shape=jax.ShapeDtypeStruct((rows, lanes), x.dtype),
        grid=(num_blocks,),
        in_specs=[in_spec],
        out_specs=pl.BlockSpec((block_rows, lanes), lambda i: (i, 0)),
        compiler_params=pltpu.CompilerParams(
            dimension_semantics=("parallel",),
            vmem_limit_bytes=_VMEM_LIMIT_BYTES,
        ),
        cost_estimate=pl.CostEstimate(
            flops=0,
            transcendentals=0,
            bytes_accessed=2 * total * itemsize,
        ),
    )(x2)

    return y2.reshape(orig_shape)


if __name__ == "__main__":
    key = jax.random.PRNGKey(0)
    # Small NCHW input consistent with a backbone forward: batch=2, C=4, 16x16.
    x = jax.random.normal(key, (2, 4, 16, 16), dtype=jnp.float32)

    y = backbone2_base_forward(x)
    y = jax.block_until_ready(y)

    assert y.shape == x.shape, (y.shape, x.shape)
    assert y.dtype == x.dtype, (y.dtype, x.dtype)
    assert bool(jnp.allclose(y, x)), "forward pass-through mismatch"

    print("KERNEL_OK")
</pallas_src>

<mosaic_0001>
module attributes {stable_mosaic.version = 11 : i64} {
  func.func @_copy_kernel(%arg0: i32, %arg1: memref<1x2048xf32, #tpu.memory_space<vmem>>, %arg2: memref<1x2048xf32, #tpu.memory_space<vmem>>) attributes {dimension_semantics = [#tpu.dimension_semantics<parallel>], iteration_bounds = array<i64: 1>, scalar_prefetch = 0 : i64, scratch_operands = 0 : i64, tpu.core_type = #tpu.core_type<tc>, window_params = [{transform_indices = @transform_0, window_bounds = array<i64: 1, 2048>}, {transform_indices = @transform_1, window_bounds = array<i64: 1, 2048>}]} {
    %c0 = arith.constant 0 : index
    %c0_0 = arith.constant 0 : index
    %0 = vector.load %arg1[%c0, %c0_0] : memref<1x2048xf32, #tpu.memory_space<vmem>>, vector<1x2048xf32>
    %c0_1 = arith.constant 0 : index
    %c0_2 = arith.constant 0 : index
    %1 = vector.load %arg2[%c0_1, %c0_2] : memref<1x2048xf32, #tpu.memory_space<vmem>>, vector<1x2048xf32>
    tpu.vector_store %arg2[%c0_1, %c0_2], %0 {strides = array<i32>} : memref<1x2048xf32, #tpu.memory_space<vmem>>, vector<1x2048xf32>,
    return
  }
  func.func @transform_0(%arg0: i32) -> (i32, i32) {
    %c0_i32 = arith.constant 0 : i32
    %c0_i32_0 = arith.constant 0 : i32
    return %arg0, %c0_i32 : i32, i32
  }
  func.func @transform_1(%arg0: i32) -> (i32, i32) {
    %c0_i32 = arith.constant 0 : i32
    %c0_i32_0 = arith.constant 0 : i32
    return %arg0, %c0_i32 : i32, i32
  }
}

</mosaic_0001>

<llo_original>
// kernel: tpu_custom_call.1
$region0: #{tpu_custom_call.1}
  #allocation0 [shape = 'u32[]', space=smem, size = 0x4, offset = 0x4, fixed_abs, tag = 'smem constant byte address 0x4 - core index']
  #allocation1 [shape = 'u32[144,128]{1,0:T(1,128)}', space=vmem, size = 0x12000, scoped, tag = 'internal scratch']
  %s0 = inlined_call_operand.hbm [shape: f32[1,2048], index: 0, kind: input, shape index: {}]
  %s1 = inlined_call_operand.hbm [shape: f32[1,2048], index: 1, kind: output, shape index: {}]
  %s2 = sld [smem:[#allocation0]]
  $region18: #{tpu_custom_call.1} parent=0
    _
  %s4 = ssub.s32 1, %s2
  %s5 = scalar_select 0, %s4, %s2
  $region1: #{tpu_custom_call.1} parent=0
    #allocation2 [shape = 'u8[8192]{0}', space=vmem, size = 0x2000, scoped, tag = 'input window, operand 0, single buffered']
    #allocation3 [shape = 's32[1]{0}', space=sflag, size = 0x4, scoped, tag = 'scoped memory for tpu_custom_call.1']
    #allocation4 [shape = 's32[1]{0}', space=sflag, size = 0x4, scoped, tag = 'scoped memory for tpu_custom_call.1']
    #allocation5 [shape = 'u8[8192]{0}', space=vmem, size = 0x2000, scoped, tag = 'output window, operand 0, single buffered']
    %6 = vsyncpa [#allocation3], 0
    %7 = vsyncpa [#allocation4], 0
    // Predicated region
    $region2: #{tpu_custom_call.1} parent=1 // pred_check
      _
    $region3: #{tpu_custom_call.1} parent=1 // pred_check_branch
      %9 = sbr.rel (0) target = $region5
    $region4: #{tpu_custom_call.1} parent=1 // pred_region
      %s11 = ssub.s32 256, 256
      %12 = vsyncadd [#allocation3], %s11
      %s14 = sshll.u32 [#allocation2], 4
      %s15 = int_to_ptr.vmem [resolvable:$true] %s14
      %17 = dma.hbm_to_vmem [thread:$0]  %s0, 256, %s15, [#allocation3]
    $region5: #{tpu_custom_call.1} parent=1 // pred_fallthru
      _
    // Predicated region
    $region6: #{tpu_custom_call.1} parent=1 // pred_check
      _
    $region7: #{tpu_custom_call.1} parent=1 // pred_check_branch
      %19 = sbr.rel (0) target = $region9
    $region8: #{tpu_custom_call.1} parent=1 // pred_region
      %20 = dma.done [#allocation3], 256
    $region9: #{tpu_custom_call.1} parent=1 // pred_fallthru
      _
    %v21 = vld [vmem:[#allocation2] sm:$0xff]
    %v22 = vld [vmem:[#allocation2 + $0x8] sm:$0xff]
    %23 = vst [vmem:[#allocation5] sm:$0xff] %v21
    %24 = vst [vmem:[#allocation5 + $0x8] sm:$0xff] %v22
    // Predicated region
    $region10: #{tpu_custom_call.1} parent=1 // pred_check
      _
    $region11: #{tpu_custom_call.1} parent=1 // pred_check_branch
      %26 = sbr.rel (0) target = $region13
    $region12: #{tpu_custom_call.1} parent=1 // pred_region
      %s28 = ssub.s32 256, 256
      %29 = vsyncadd [#allocation4], %s28
      %s31 = sshll.u32 [#allocation5], 4
      %s32 = int_to_ptr.vmem [resolvable:$true] %s31
      %34 = dma.vmem_to_hbm [thread:$0]  %s32, 256, %s1, [#allocation4]
    $region13: #{tpu_custom_call.1} parent=1 // pred_fallthru
      _
    // Predicated region
    $region14: #{tpu_custom_call.1} parent=1 // pred_check
      _
    $region15: #{tpu_custom_call.1} parent=1 // pred_check_branch
      %36 = sbr.rel (0) target = $region17
    $region16: #{tpu_custom_call.1} parent=1 // pred_region
      %37 = dma.done [#allocation4], 256
    $region17: #{tpu_custom_call.1} parent=1 // pred_fallthru
      _
    %38 = vsyncpa [#allocation3], 1
    %39 = vsyncpa [#allocation4], 1

</llo_original>
